<compile_context>
chip_gen: v7x
topology: tpu7x:2x2x1
jax: 0.10.0
libtpu: 0.0.40
codegen_flags: <defaults>
</compile_context>

<pallas_src>
import jax
import jax.numpy as jnp
from jax.experimental import pallas as pl
from jax.experimental.pallas import tpu as pltpu

_SMOOTH = 1.0


def _dice_partials_kernel(x_ref, t_ref, acc_ref):
    # x_ref / t_ref : (tn, tc, sk, 128) VMEM input blocks (lane-dense).
    # acc_ref       : (1, 2, tc, 128) f32 VMEM output block.  Its block index
    #                 is constant along the spatial grid axis, so it is the
    #                 resident accumulator for this (batch-block, class-block).
    #                 Row 0 = lane partials of sum(x*t) per class,
    #                 row 1 = lane partials of sum(x) + sum(t) per class.
    sb = pl.program_id(2)

    @pl.when(sb == 0)
    def _init():
        acc_ref[...] = jnp.zeros_like(acc_ref)

    x = x_ref[...].astype(jnp.float32)
    t = t_ref[...].astype(jnp.float32)

    # Reduce the batch dim (cheap whole-tile adds) then the sublane dim; keep
    # the 128 lanes as partials -> no per-step cross-lane (XLU) reduction.
    inter = jnp.sum(jnp.sum(x * t, axis=0), axis=1)   # (tc, 128)
    sums = jnp.sum(jnp.sum(x + t, axis=0), axis=1)    # (tc, 128)  == sum(x)+sum(t)

    acc_ref[0, 0] = acc_ref[0, 0] + inter
    acc_ref[0, 1] = acc_ref[0, 1] + sums


def _vmem_limit_bytes():
    """Generation-aware VMEM limit: ~3/4 of physical VMEM, clamped."""
    cap = 64 << 20  # conservative default (v7x per-TensorCore VMEM)
    try:
        info = pltpu.get_tpu_info()
        cap = int(getattr(info, "vmem_capacity_bytes", cap) or cap)
    except Exception:
        pass
    return max(32 << 20, min((cap * 3) // 4, 96 << 20))


def _pick_tiles(N, C, K, in_item, tgt_item, budget):
    """Pick (tn, tc, sk) block sizes for arrays shaped (N, C, K, 128).

    Constraints (8,128 rule on the last two block dims):
      tn | N (no alignment needed);
      tc | C with tc % 8 == 0 or tc == C (output block's 2nd-to-last dim);
      sk | K with sk % 8 == 0 or sk == K (input block's 2nd-to-last dim).
    Prefers >= 2 (batch x class) parallel blocks so both TensorCores run on
    dual-core chips (v7x), then the largest block that fits the VMEM budget
    (double-buffered inputs + f32 upcast temporaries).
    """
    tn_opts = [d for d in range(N, 0, -1) if N % d == 0]
    tc_opts = [d for d in range(C, 0, -1) if C % d == 0 and (d % 8 == 0 or d == C)]
    sk_opts = [d for d in range(K, 0, -1) if K % d == 0 and (d % 8 == 0 or d == K)]

    def fits(tn, tc, sk):
        blk = tn * tc * sk * 128
        dma_bufs = 2 * blk * (in_item + tgt_item)   # double-buffered input windows
        f32_tmp = 3 * blk * 4                       # upcasts + elementwise temporaries
        acc = 2 * 2 * tc * 128 * 4                  # resident output block (x2 bufs)
        return dma_bufs + f32_tmp + acc <= budget

    min_par = 2 if N * C >= 2 else 1
    for need_par in (True, False):
        for tn in tn_opts:
            for tc in tc_opts:
                if need_par and (N // tn) * (C // tc) < min_par:
                    continue
                for sk in sk_opts:
                    if fits(tn, tc, sk):
                        return tn, tc, sk
    return 1, tc_opts[-1], sk_opts[-1]  # best effort; vmem_limit gives headroom


def multiclass_dice(inp, tgt, weights=None):
    """Pallas TPU equivalent of MulticlassDice.forward(input, target, weights)."""
    assert inp.shape == tgt.shape, (inp.shape, tgt.shape)
    N, C, H, W = tgt.shape
    S = H * W

    x = inp.reshape(N, C, S)
    t = tgt.reshape(N, C, S)
    pad = (-S) % 128
    if pad:  # zero padding is exact for Dice sums (rare path; test shapes skip it)
        x = jnp.pad(x, ((0, 0), (0, 0), (0, pad)))
        t = jnp.pad(t, ((0, 0), (0, 0), (0, pad)))
    K = (S + pad) // 128
    x = x.reshape(N, C, K, 128)   # free, contiguous reshape -> lane-dense blocks
    t = t.reshape(N, C, K, 128)

    vmem_limit = _vmem_limit_bytes()
    tn, tc, sk = _pick_tiles(N, C, K, x.dtype.itemsize, t.dtype.itemsize,
                             budget=int(vmem_limit * 0.6))
    nblk, cblk, kblk = N // tn, C // tc, K // sk

    cost = pl.CostEstimate(
        flops=4 * x.size + 8 * C,
        transcendentals=0,
        bytes_accessed=(x.size * x.dtype.itemsize + t.size * t.dtype.itemsize
                        + nblk * 2 * C * 128 * 4),
    )

    # NOTE: the spatial (reduction) grid axis must remain LAST and "arbitrary":
    # the output block index is constant along it, so the output block acts as
    # the resident accumulator for each (batch-block, class-block) pair.
    partials = pl.pallas_call(
        _dice_partials_kernel,
        out_shape=jax.ShapeDtypeStruct((nblk, 2, C, 128), jnp.float32),
        grid=(nblk, cblk, kblk),
        in_specs=[
            pl.BlockSpec((tn, tc, sk, 128), lambda b, c, s: (b, c, s, 0)),
            pl.BlockSpec((tn, tc, sk, 128), lambda b, c, s: (b, c, s, 0)),
        ],
        out_specs=pl.BlockSpec((1, 2, tc, 128), lambda b, c, s: (b, 0, c, 0)),
        compiler_params=pltpu.CompilerParams(
            dimension_semantics=("parallel", "parallel", "arbitrary"),
            vmem_limit_bytes=vmem_limit),
        cost_estimate=cost,
    )(x, t)

    # Tiny epilogue in plain JAX: reduce batch-blocks + lanes, smooth divide,
    # optional per-class weights, mean over classes (matches the reference).
    inter = jnp.sum(partials[:, 0], axis=(0, 2))   # (C,)
    sums = jnp.sum(partials[:, 1], axis=(0, 2))    # (C,)
    dice = (2.0 * inter + _SMOOTH) / (sums + _SMOOTH)
    if weights is not None:
        dice = dice * weights.astype(jnp.float32)
    return jnp.sum(dice) / C


def _reference(inp, tgt, weights=None):
    inp = inp.astype(jnp.float32)
    tgt = tgt.astype(jnp.float32)
    N, C = tgt.shape[0], tgt.shape[1]
    total = jnp.float32(0.0)
    for i in range(C):
        xi = inp[:, i, :, :].reshape(N, -1)
        ti = tgt[:, i, :, :].reshape(N, -1)
        inter = jnp.sum(xi * ti)
        d = (2.0 * inter + 1.0) / (jnp.sum(xi) + jnp.sum(ti) + 1.0)
        if weights is not None:
            d = d * weights[i]
        total = total + d
    return total / C


if __name__ == "__main__":
    key = jax.random.PRNGKey(0)
    k1, k2 = jax.random.split(key)
    N, C, H, W = 2, 4, 16, 16
    inp = jax.random.uniform(k1, (N, C, H, W), dtype=jnp.float32)            # predictions
    # binary target; bf16 is exact for {0,1} and halves its HBM traffic
    tgt = (jax.random.uniform(k2, (N, C, H, W)) > 0.5).astype(jnp.bfloat16)

    out = jax.block_until_ready(multiclass_dice(inp, tgt))
    ref = _reference(inp, tgt)
    assert jnp.allclose(out, ref, rtol=1e-5, atol=1e-5), (out, ref)

    # weighted variant sanity check
    w = jnp.array([1.0, 0.5, 2.0, 0.25], dtype=jnp.float32)
    out_w = jax.block_until_ready(multiclass_dice(inp, tgt, w))
    ref_w = _reference(inp, tgt, w)
    assert jnp.allclose(out_w, ref_w, rtol=1e-5, atol=1e-5), (out_w, ref_w)

    print("KERNEL_OK")
</pallas_src>

<mosaic_0001>
module attributes {stable_mosaic.version = 11 : i64} {
  func.func @_dice_partials_kernel(%arg0: i32, %arg1: i32, %arg2: i32, %arg3: memref<1x4x2x128xf32, #tpu.memory_space<vmem>>, %arg4: memref<1x4x2x128xbf16, #tpu.memory_space<vmem>>, %arg5: memref<1x2x4x128xf32, #tpu.memory_space<vmem>>) attributes {dimension_semantics = [#tpu.dimension_semantics<parallel>, #tpu.dimension_semantics<parallel>, #tpu.dimension_semantics<arbitrary>], iteration_bounds = array<i64: 2, 1, 1>, scalar_prefetch = 0 : i64, scratch_operands = 0 : i64, tpu.core_type = #tpu.core_type<tc>, window_params = [{transform_indices = @transform_0, window_bounds = array<i64: 1, 4, 2, 128>}, {transform_indices = @transform_1, window_bounds = array<i64: 1, 4, 2, 128>}, {transform_indices = @transform_2, window_bounds = array<i64: 1, 2, 4, 128>}]} {
    %c0_i32 = arith.constant 0 : i32
    %0 = arith.cmpi eq, %arg2, %c0_i32 : i32
    %1 = arith.extui %0 : i1 to i32
    %c0_i32_0 = arith.constant 0 : i32
    %2 = arith.cmpi ne, %1, %c0_i32_0 : i32
    scf.if %2 {
      %cst_26 = arith.constant 0.000000e+00 : f32
      %24 = vector.broadcast %cst_26 : f32 to vector<1x2x4x128xf32>
      %c0_27 = arith.constant 0 : index
      %c0_28 = arith.constant 0 : index
      %c0_29 = arith.constant 0 : index
      %c0_30 = arith.constant 0 : index
      %25 = vector.load %arg5[%c0_27, %c0_28, %c0_29, %c0_30] : memref<1x2x4x128xf32, #tpu.memory_space<vmem>>, vector<1x2x4x128xf32>
      tpu.vector_store %arg5[%c0_27, %c0_28, %c0_29, %c0_30], %24 {strides = array<i32>} : memref<1x2x4x128xf32, #tpu.memory_space<vmem>>, vector<1x2x4x128xf32>,
    } else {
    }
    %c0 = arith.constant 0 : index
    %c0_1 = arith.constant 0 : index
    %c0_2 = arith.constant 0 : index
    %c0_3 = arith.constant 0 : index
    %3 = vector.load %arg3[%c0, %c0_1, %c0_2, %c0_3] : memref<1x4x2x128xf32, #tpu.memory_space<vmem>>, vector<1x4x2x128xf32>
    %c0_4 = arith.constant 0 : index
    %c0_5 = arith.constant 0 : index
    %c0_6 = arith.constant 0 : index
    %c0_7 = arith.constant 0 : index
    %4 = vector.load %arg4[%c0_4, %c0_5, %c0_6, %c0_7] : memref<1x4x2x128xbf16, #tpu.memory_space<vmem>>, vector<1x4x2x128xbf16>
    %5 = arith.extf %4 : vector<1x4x2x128xbf16> to vector<1x4x2x128xf32>
    %6 = arith.mulf %3, %5 : vector<1x4x2x128xf32>
    %cst = arith.constant dense<0.000000e+00> : vector<4x2x128xf32>
    %7 = vector.multi_reduction <add>, %6, %cst [0] : vector<1x4x2x128xf32> to vector<4x2x128xf32>
    %cst_8 = arith.constant dense<0.000000e+00> : vector<4x128xf32>
    %8 = vector.multi_reduction <add>, %7, %cst_8 [1] : vector<4x2x128xf32> to vector<4x128xf32>
    %9 = arith.addf %3, %5 : vector<1x4x2x128xf32>
    %cst_9 = arith.constant dense<0.000000e+00> : vector<4x2x128xf32>
    %10 = vector.multi_reduction <add>, %9, %cst_9 [0] : vector<1x4x2x128xf32> to vector<4x2x128xf32>
    %cst_10 = arith.constant dense<0.000000e+00> : vector<4x128xf32>
    %11 = vector.multi_reduction <add>, %10, %cst_10 [1] : vector<4x2x128xf32> to vector<4x128xf32>
    %c0_11 = arith.constant 0 : index
    %c0_12 = arith.constant 0 : index
    %c0_13 = arith.constant 0 : index
    %c0_14 = arith.constant 0 : index
    %12 = vector.load %arg5[%c0_11, %c0_12, %c0_13, %c0_14] : memref<1x2x4x128xf32, #tpu.memory_space<vmem>>, vector<1x1x4x128xf32>
    %13 = vector.shape_cast %12 : vector<1x1x4x128xf32> to vector<4x128xf32>
    %14 = arith.addf %13, %8 : vector<4x128xf32>
    %c0_15 = arith.constant 0 : index
    %c0_16 = arith.constant 0 : index
    %c0_17 = arith.constant 0 : index
    %c0_18 = arith.constant 0 : index
    %15 = vector.load %arg5[%c0_15, %c0_16, %c0_17, %c0_18] : memref<1x2x4x128xf32, #tpu.memory_space<vmem>>, vector<1x1x4x128xf32>
    %16 = vector.shape_cast %15 : vector<1x1x4x128xf32> to vector<4x128xf32>
    %17 = vector.shape_cast %14 : vector<4x128xf32> to vector<1x1x4x128xf32>
    tpu.vector_store %arg5[%c0_15, %c0_16, %c0_17, %c0_18], %17 {strides = array<i32>} : memref<1x2x4x128xf32, #tpu.memory_space<vmem>>, vector<1x1x4x128xf32>,
    %c0_19 = arith.constant 0 : index
    %c1 = arith.constant 1 : index
    %c0_20 = arith.constant 0 : index
    %c0_21 = arith.constant 0 : index
    %18 = vector.load %arg5[%c0_19, %c1, %c0_20, %c0_21] : memref<1x2x4x128xf32, #tpu.memory_space<vmem>>, vector<1x1x4x128xf32>
    %19 = vector.shape_cast %18 : vector<1x1x4x128xf32> to vector<4x128xf32>
    %20 = arith.addf %19, %11 : vector<4x128xf32>
    %c0_22 = arith.constant 0 : index
    %c1_23 = arith.constant 1 : index
    %c0_24 = arith.constant 0 : index
    %c0_25 = arith.constant 0 : index
    %21 = vector.load %arg5[%c0_22, %c1_23, %c0_24, %c0_25] : memref<1x2x4x128xf32, #tpu.memory_space<vmem>>, vector<1x1x4x128xf32>
    %22 = vector.shape_cast %21 : vector<1x1x4x128xf32> to vector<4x128xf32>
    %23 = vector.shape_cast %20 : vector<4x128xf32> to vector<1x1x4x128xf32>
    tpu.vector_store %arg5[%c0_22, %c1_23, %c0_24, %c0_25], %23 {strides = array<i32>} : memref<1x2x4x128xf32, #tpu.memory_space<vmem>>, vector<1x1x4x128xf32>,
    return
  }
  func.func @transform_0(%arg0: i32, %arg1: i32, %arg2: i32) -> (i32, i32, i32, i32) {
    %c0_i32 = arith.constant 0 : i32
    %c0_i32_0 = arith.constant 0 : i32
    return %arg0, %arg1, %arg2, %c0_i32 : i32, i32, i32, i32
  }
  func.func @transform_1(%arg0: i32, %arg1: i32, %arg2: i32) -> (i32, i32, i32, i32) {
    %c0_i32 = arith.constant 0 : i32
    %c0_i32_0 = arith.constant 0 : i32
    return %arg0, %arg1, %arg2, %c0_i32 : i32, i32, i32, i32
  }
  func.func @transform_2(%arg0: i32, %arg1: i32, %arg2: i32) -> (i32, i32, i32, i32) {
    %c0_i32 = arith.constant 0 : i32
    %c0_i32_0 = arith.constant 0 : i32
    %c0_i32_1 = arith.constant 0 : i32
    return %arg0, %c0_i32, %arg1, %c0_i32_0 : i32, i32, i32, i32
  }
}

</mosaic_0001>

<llo_original>
// kernel: tpu_custom_call.1
$region0: #{tpu_custom_call.1}
  #allocation0 [shape = 'u32[]', space=smem, size = 0x4, offset = 0x4, fixed_abs, tag = 'smem constant byte address 0x4 - core index']
  #allocation1 [shape = 'u32[144,128]{1,0:T(1,128)}', space=vmem, size = 0x12000, scoped, tag = 'internal scratch']
  %s0 = inlined_call_operand.hbm [shape: f32[2,4,2,128], index: 0, kind: input, shape index: {}]
  %s1 = inlined_call_operand.hbm [shape: bf16[2,4,2,128], index: 1, kind: input, shape index: {}]
  %s2 = inlined_call_operand.hbm [shape: f32[2,2,4,128], index: 2, kind: output, shape index: {}]
  %s3 = sld [smem:[#allocation0]]
  $region53: #{tpu_custom_call.1} parent=0
    _
  %s5 = ssub.s32 1, %s3
  %s6 = scalar_select 0, %s5, %s3
  $region1: #{tpu_custom_call.1} parent=0
    #allocation2 [shape = 'u8[8192]{0}', space=vmem, size = 0x2000, scoped, tag = 'input window, operand 0']
    #allocation3 [shape = 's32[2]{0}', space=sflag, size = 0x8, scoped, tag = 'scoped memory for tpu_custom_call.1']
    #allocation4 [shape = 's32[2]{0}', space=sflag, size = 0x8, scoped, tag = 'scoped memory for tpu_custom_call.1']
    #allocation5 [shape = 'u8[4096]{0}', space=vmem, size = 0x1000, scoped, tag = 'input window, operand 1']
    #allocation6 [shape = 's32[2]{0}', space=sflag, size = 0x8, scoped, tag = 'scoped memory for tpu_custom_call.1']
    #allocation7 [shape = 'u8[8192]{0}', space=vmem, size = 0x2000, scoped, tag = 'output window, operand 0']
    %7 = vsyncpa [#allocation3], 0
    %s8 = scalar_lea.sflag [#allocation3], 1
    %9 = vsyncpa %s8, 0
    %10 = vsyncpa [#allocation6], 0
    %s11 = scalar_lea.sflag [#allocation6], 1
    %12 = vsyncpa %s11, 0
    %13 = vsyncpa [#allocation4], 0
    %s14 = scalar_lea.sflag [#allocation4], 1
    %15 = vsyncpa %s14, 0
    loop: start=0, step=1, limit=4
    $region2: #{tpu_custom_call.1} parent=1 // loop_pre_header
      _
    $region3: #{tpu_custom_call.1} parent=1 // loop_header
      %s17 = sphi 0, %s21
      %p18 = scmp.ge.s32.totalorder %s17, 4
      %s24 = sphi 0, %s43
      %s25 = sphi 0, %s39
      %s26 = sphi 0, %s35
      %s27 = sphi 0, %s24
      %s28 = sphi 0, %s25
      %s29 = sphi 0, %s26
      %s30 = sphi 0, %s27
      %s31 = sphi 0, %s28
      %s32 = sphi 0, %s29
      %s50 = sphi 0, %s52
      %s53 = sphi 0, %s50
      %s54 = sphi 0, %s53
      %s70 = sphi 0, %s54
      %s80 = sphi 0, %s82
      %s83 = sphi 0, %s80
      %s84 = sphi 0, %s83
      %s100 = sphi 0, %s84
      %s108 = sphi 0, %s110
      %s111 = sphi 0, %s108
      %s112 = sphi 0, %s111
      %s128 = sphi 0, %s112
    $region4: #{tpu_custom_call.1} parent=1 // loop_header_branch
      %20 = sbr.rel (%p18) target = $region8
    $region5: #{tpu_custom_call.1} parent=1 // loop_body
      %s22 = ssub.s32 %s17, 1
      %s23 = ssub.s32 %s17, 2
      %s33 = sadd.s32 1, %s26
      %p34 = scmp.ge.s32.totalorder %s33, 1
      %s35 = scalar_select %p34, 0, %s33
      %s36 = sadd.s32 1, %s25
      %s37 = scalar_select %p34, %s36, %s25
      %p38 = scmp.ge.s32.totalorder %s37, 1
      %s39 = scalar_select %p38, 0, %s37
      %s40 = sadd.s32 1, %s24
      %s41 = scalar_select %p38, %s40, %s24
      %p42 = scmp.ge.s32.totalorder %s41, 2
      %s43 = scalar_select %p42, 0, %s41
      %s44 = ssub.s32 %s24, %s43
      %s45 = ssub.s32 %s25, %s39
      %s46 = sor.u32 %s44, %s45
      %s47 = ssub.s32 %s26, %s35
      %s48 = sor.u32 %s46, %s47
      %p49 = scmp.eq.s32.totalorder %s48, 0
      %s51 = sadd.s32 %s50, 1
      %s52 = scalar_select %p49, %s50, %s51
      %p55 = pneg %p49
      %p56 = scmp.eq.s32.totalorder %s17, 1
      %p57 = por %p55, %p56
      %p58 = scmp.ne.s32.totalorder %s50, %s53
      %p59 = scmp.eq.s32.totalorder %s17, 0
      %p60 = por %p58, %p59
      %p61 = scmp.ne.s32.totalorder %s50, %s53
      %p62 = scmp.eq.s32.totalorder %s22, 1
      %p63 = por %p61, %p62
      %p64 = scmp.ne.s32.totalorder %s53, %s54
      %p65 = scmp.eq.s32.totalorder %s22, 0
      %p66 = por %p64, %p65
      %p67 = scmp.ne.s32.totalorder %s53, %s54
      %p68 = scmp.eq.s32.totalorder %s23, 1
      %p69 = por %p67, %p68
      %p71 = scmp.ne.s32.totalorder %s54, %s70
      %p72 = scmp.eq.s32.totalorder %s23, 0
      %p73 = por %p71, %p72
      %s74 = ssub.s32 %s24, %s43
      %s75 = ssub.s32 %s25, %s39
      %s76 = sor.u32 %s74, %s75
      %s77 = ssub.s32 %s26, %s35
      %s78 = sor.u32 %s76, %s77
      %p79 = scmp.eq.s32.totalorder %s78, 0
      %s81 = sadd.s32 %s80, 1
      %s82 = scalar_select %p79, %s80, %s81
      %p85 = pneg %p79
      %p86 = scmp.eq.s32.totalorder %s17, 1
      %p87 = por %p85, %p86
      %p88 = scmp.ne.s32.totalorder %s80, %s83
      %p89 = scmp.eq.s32.totalorder %s17, 0
      %p90 = por %p88, %p89
      %p91 = scmp.ne.s32.totalorder %s80, %s83
      %p92 = scmp.eq.s32.totalorder %s22, 1
      %p93 = por %p91, %p92
      %p94 = scmp.ne.s32.totalorder %s83, %s84
      %p95 = scmp.eq.s32.totalorder %s22, 0
      %p96 = por %p94, %p95
      %p97 = scmp.ne.s32.totalorder %s83, %s84
      %p98 = scmp.eq.s32.totalorder %s23, 1
      %p99 = por %p97, %p98
      %p101 = scmp.ne.s32.totalorder %s84, %s100
      %p102 = scmp.eq.s32.totalorder %s23, 0
      %p103 = por %p101, %p102
      %s104 = ssub.s32 %s24, %s43
      %s105 = ssub.s32 %s25, %s39
      %s106 = sor.u32 %s104, %s105
      %p107 = scmp.eq.s32.totalorder %s106, 0
      %s109 = sadd.s32 %s108, 1
      %s110 = scalar_select %p107, %s108, %s109
      %p113 = pneg %p107
      %p114 = scmp.eq.s32.totalorder %s17, 1
      %p115 = por %p113, %p114
      %p116 = scmp.ne.s32.totalorder %s108, %s111
      %p117 = scmp.eq.s32.totalorder %s17, 0
      %p118 = por %p116, %p117
      %p119 = scmp.ne.s32.totalorder %s108, %s111
      %p120 = scmp.eq.s32.totalorder %s22, 1
      %p121 = por %p119, %p120
      %p122 = scmp.ne.s32.totalorder %s111, %s112
      %p123 = scmp.eq.s32.totalorder %s22, 0
      %p124 = por %p122, %p123
      %p125 = scmp.ne.s32.totalorder %s111, %s112
      %p126 = scmp.eq.s32.totalorder %s23, 1
      %p127 = por %p125, %p126
      %p129 = scmp.ne.s32.totalorder %s112, %s128
      %p130 = scmp.eq.s32.totalorder %s23, 0
      %p131 = por %p129, %p130
      %p132 = scmp.le.s32.totalorder 1, %s17
      %p133 = scmp.lt.s32.totalorder %s17, 3
      %p134 = pnand %p132, %p133
      %p135 = pneg %p134
      // Predicated region
      $region9: #{tpu_custom_call.1} parent=5 // pred_check
        _
      $region10: #{tpu_custom_call.1} parent=5 // pred_check_branch
        %137 = sbr.rel (%p134) target = $region12
      $region11: #{tpu_custom_call.1} parent=5 // pred_region
        %s138 = ssub.s32 %s17, 1
      $region12: #{tpu_custom_call.1} parent=5 // pred_fallthru
        _
      %p139 = scmp.lt.s32.totalorder %s17, 2
      // Predicated region
      $region13: #{tpu_custom_call.1} parent=5 // pred_check
        %p140 = pneg %p139
      $region14: #{tpu_custom_call.1} parent=5 // pred_check_branch
        %142 = sbr.rel (%p140) target = $region16
      $region15: #{tpu_custom_call.1} parent=5 // pred_region
        // Predicated region
        $region17: #{tpu_custom_call.1} parent=15 // pred_check
          %p143 = pneg %p60
        $region18: #{tpu_custom_call.1} parent=15 // pred_check_branch
          %145 = sbr.rel (%p143) target = $region20
        $region19: #{tpu_custom_call.1} parent=15 // pred_region
          %s146 = sand.u32 %s50, 1
          %s147 = scalar_lea.sflag [#allocation3], %s146
          %s148 = sand.u32 %s50, 1
          %s149 = smul.addr %s148, 8
          %s150 = scalar_lea.vmem [#allocation2], %s149
          %s151 = smul.u32 4, %s25
          %s153 = ssub.s32 128, 128
          %154 = vsyncadd %s147, %s153
          %s155 = sadd.s32 %s26, %s151
          %s156 = smul.addr %s24, 4
          %s157 = sadd.s32 %s155, %s156
          %s158 = smul.addr %s157, 32
          %s159 = scalar_lea.hbm %s0, %s158
          %s160 = sshll.u32 %s150, 4
          %s161 = int_to_ptr.vmem [resolvable:$true] %s160
          %166 = dma.hbm_to_vmem [thread:$0]  %s159, 128, %s161, %s147, 32, 32, 2
        $region20: #{tpu_custom_call.1} parent=15 // pred_fallthru
          _
        // Predicated region
        $region21: #{tpu_custom_call.1} parent=15 // pred_check
          %p167 = pneg %p90
        $region22: #{tpu_custom_call.1} parent=15 // pred_check_branch
          %169 = sbr.rel (%p167) target = $region24
        $region23: #{tpu_custom_call.1} parent=15 // pred_region
          %s170 = sand.u32 %s80, 1
          %s171 = scalar_lea.sflag [#allocation6], %s170
          %s172 = sand.u32 %s80, 1
          %s173 = smul.addr %s172, 4
          %s174 = scalar_lea.vmem [#allocation5], %s173
          %s175 = smul.u32 4, %s25
          %s177 = ssub.s32 64, 64
          %178 = vsyncadd %s171, %s177
          %s179 = sadd.s32 %s26, %s175
          %s180 = smul.addr %s24, 4
          %s181 = sadd.s32 %s179, %s180
          %s182 = smul.addr %s181, 16
          %s183 = scalar_lea.hbm %s1, %s182
          %s184 = sshll.u32 %s174, 4
          %s185 = int_to_ptr.vmem [resolvable:$true] %s184
          %190 = dma.hbm_to_vmem [thread:$0]  %s183, 64, %s185, %s171, 16, 16, 1
        $region24: #{tpu_custom_call.1} parent=15 // pred_fallthru
          _
      $region16: #{tpu_custom_call.1} parent=5 // pred_fallthru
        _
      %p191 = scmp.le.s32.totalorder 1, %s17
      %p192 = scmp.lt.s32.totalorder %s17, 3
      %p193 = pnand %p191, %p192
      %p194 = pneg %p193
      // Predicated region
      $region25: #{tpu_custom_call.1} parent=5 // pred_check
        _
      $region26: #{tpu_custom_call.1} parent=5 // pred_check_branch
        %196 = sbr.rel (%p193) target = $region28
      $region27: #{tpu_custom_call.1} parent=5 // pred_region
        %s197 = ssub.s32 %s17, 1
        %s198 = sand.u32 %s53, 1
        %s199 = scalar_lea.sflag [#allocation3], %s198
        %s200 = sand.u32 %s53, 1
        %s201 = smul.addr %s200, 8
        %s202 = scalar_lea.vmem [#allocation2], %s201
        // Predicated region
        $region29: #{tpu_custom_call.1} parent=27 // pred_check
          %p203 = pneg %p66
        $region30: #{tpu_custom_call.1} parent=27 // pred_check_branch
          %205 = sbr.rel (%p203) target = $region32
        $region31: #{tpu_custom_call.1} parent=27 // pred_region
          %206 = dma.done %s199, 128
        $region32: #{tpu_custom_call.1} parent=27 // pred_fallthru
          _
        %s207 = sand.u32 %s83, 1
        %s208 = scalar_lea.sflag [#allocation6], %s207
        %s209 = sand.u32 %s83, 1
        %s210 = smul.addr %s209, 4
        %s211 = scalar_lea.vmem [#allocation5], %s210
        // Predicated region
        $region33: #{tpu_custom_call.1} parent=27 // pred_check
          %p212 = pneg %p96
        $region34: #{tpu_custom_call.1} parent=27 // pred_check_branch
          %214 = sbr.rel (%p212) target = $region36
        $region35: #{tpu_custom_call.1} parent=27 // pred_region
          %215 = dma.done %s208, 64
        $region36: #{tpu_custom_call.1} parent=27 // pred_fallthru
          _
        %s216 = sand.u32 %s53, 1
        %s217 = scalar_lea.sflag [#allocation3], %s216
        %s218 = sand.u32 %s53, 1
        %s219 = smul.addr %s218, 8
        %s220 = scalar_lea.vmem [#allocation2], %s219
        %p221 = pneg %p66
        %p222 = pneg %p63
        %s223 = sand.u32 %s83, 1
        %s224 = scalar_lea.sflag [#allocation6], %s223
        %s225 = sand.u32 %s83, 1
        %s226 = smul.addr %s225, 4
        %s227 = scalar_lea.vmem [#allocation5], %s226
        %p228 = pneg %p96
        %p229 = pneg %p93
        %p230 = pneg %p124
        %p231 = pneg %p121
        %s232 = sand.u32 %s111, 1
        %s233 = scalar_lea.sflag [#allocation4], %s232
        %s234 = sand.u32 %s111, 1
        %s235 = smul.addr %s234, 8
        %s236 = scalar_lea.vmem [#allocation7], %s235
        %s237 = smul.u32 4, %s28
        %s238 = smul.u32 4, %s28
        %p239 = scmp.eq.s32.totalorder %s29, 0
        // Predicated region
        $region37: #{tpu_custom_call.1} parent=27 // pred_check
          %p240 = pneg %p239
        $region38: #{tpu_custom_call.1} parent=27 // pred_check_branch
          %242 = sbr.rel (%p240) target = $region40
        $region39: #{tpu_custom_call.1} parent=27 // pred_region
          %243 = vst [vmem:[%s236] sm:$0xf] 0.0
          %244 = vst [vmem:[%s236 + $0x4] sm:$0xf] 0.0
        $region40: #{tpu_custom_call.1} parent=27 // pred_fallthru
          _
        %v245 = vld [vmem:[%s202] sm:$0x3]
        %v246 = vld [vmem:[%s202 + $0x2] sm:$0x3]
        %v247 = vld [vmem:[%s202 + $0x4] sm:$0x3]
        %v248 = vld [vmem:[%s202 + $0x6] sm:$0x3]
        %v249 = vld [vmem:[%s211] sm:$0x1]
        %v250 = vld [vmem:[%s211 + $0x1] sm:$0x1]
        %v251 = vld [vmem:[%s211 + $0x2] sm:$0x1]
        %v252 = vld [vmem:[%s211 + $0x3] sm:$0x1]
        %v253 = vunpack.c.l.bf16 %v249
        %v254 = vunpack.c.l.bf16 %v250
        %v255 = vunpack.c.l.bf16 %v251
        %v256 = vunpack.c.l.bf16 %v252
        %v257 = vmul.f32 %v245, %v253
        %v258 = vmul.f32 %v246, %v254
        %v259 = vmul.f32 %v247, %v255
        %v260 = vmul.f32 %v248, %v256
        %v261 = vadd.f32 %v257, 0.0
        %v262 = vadd.f32 %v258, 0.0
        %v263 = vadd.f32 %v259, 0.0
        %v264 = vadd.f32 %v260, 0.0
        %vm265 = vcmask 1041408
        %v266 = vsel %vm265, %v261, 0.0
        %v267 = vrot.slane %v266, 4
        %v268 = vadd.f32 %v266, %v267
        %v269 = vrot.slane %v268, 2
        %v270 = vadd.f32 %v268, %v269
        %v271 = vrot.slane %v270, 1
        %v272 = vadd.f32 %v270, %v271
        %v273 = vsel %vm265, %v262, 0.0
        %v274 = vrot.slane %v273, 4
        %v275 = vadd.f32 %v273, %v274
        %v276 = vrot.slane %v275, 2
        %v277 = vadd.f32 %v275, %v276
        %v278 = vrot.slane %v277, 1
        %v279 = vadd.f32 %v277, %v278
        %v280 = vsel %vm265, %v263, 0.0
        %v281 = vrot.slane %v280, 4
        %v282 = vadd.f32 %v280, %v281
        %v283 = vrot.slane %v282, 2
        %v284 = vadd.f32 %v282, %v283
        %v285 = vrot.slane %v284, 1
        %v286 = vadd.f32 %v284, %v285
        %v287 = vsel %vm265, %v264, 0.0
        %v288 = vrot.slane %v287, 4
        %v289 = vadd.f32 %v287, %v288
        %v290 = vrot.slane %v289, 2
        %v291 = vadd.f32 %v289, %v290
        %v292 = vrot.slane %v291, 1
        %v293 = vadd.f32 %v291, %v292
        %v294 = vadd.f32 %v245, %v253
        %v295 = vadd.f32 %v246, %v254
        %v296 = vadd.f32 %v247, %v255
        %v297 = vadd.f32 %v248, %v256
        %v298 = vadd.f32 %v294, 0.0
        %v299 = vadd.f32 %v295, 0.0
        %v300 = vadd.f32 %v296, 0.0
        %v301 = vadd.f32 %v297, 0.0
        %v302 = vsel %vm265, %v298, 0.0
        %v303 = vrot.slane %v302, 4
        %v304 = vadd.f32 %v302, %v303
        %v305 = vrot.slane %v304, 2
        %v306 = vadd.f32 %v304, %v305
        %v307 = vrot.slane %v306, 1
        %v308 = vadd.f32 %v306, %v307
        %v309 = vsel %vm265, %v299, 0.0
        %v310 = vrot.slane %v309, 4
        %v311 = vadd.f32 %v309, %v310
        %v312 = vrot.slane %v311, 2
        %v313 = vadd.f32 %v311, %v312
        %v314 = vrot.slane %v313, 1
        %v315 = vadd.f32 %v313, %v314
        %v316 = vsel %vm265, %v300, 0.0
        %v317 = vrot.slane %v316, 4
        %v318 = vadd.f32 %v316, %v317
        %v319 = vrot.slane %v318, 2
        %v320 = vadd.f32 %v318, %v319
        %v321 = vrot.slane %v320, 1
        %v322 = vadd.f32 %v320, %v321
        %v323 = vsel %vm265, %v301, 0.0
        %v324 = vrot.slane %v323, 4
        %v325 = vadd.f32 %v323, %v324
        %v326 = vrot.slane %v325, 2
        %v327 = vadd.f32 %v325, %v326
        %v328 = vrot.slane %v327, 1
        %v329 = vadd.f32 %v327, %v328
        %v330 = vld [vmem:[%s236] sm:$0xf]
        %vm335 = vcmask 1041409
        %v336 = vsel %vm335, %v279, %v272
        %vm337 = vcmask 1042434
        %v338 = vsel %vm337, %v286, %v336
        %vm339 = vcmask 1043459
        %v340 = vsel %vm339, %v293, %v338
        %v342 = vadd.f32 %v330, %v340
        %343 = vst [vmem:[%s236] sm:$0xf] %v342
        %s344 = scalar_lea.vmem %s236, 4 [#allocation7]
        %v345 = vld [vmem:[%s344] sm:$0xf]
        %v350 = vsel %vm335, %v315, %v308
        %v351 = vsel %vm337, %v322, %v350
        %v352 = vsel %vm339, %v329, %v351
        %v354 = vadd.f32 %v345, %v352
        %355 = vst [vmem:[%s344] sm:$0xf] %v354
        %s356 = sand.u32 %s111, 1
        %s357 = scalar_lea.sflag [#allocation4], %s356
        %s358 = sand.u32 %s111, 1
        %s359 = smul.addr %s358, 8
        %s360 = scalar_lea.vmem [#allocation7], %s359
        // Predicated region
        $region41: #{tpu_custom_call.1} parent=27 // pred_check
          %p361 = pneg %p121
        $region42: #{tpu_custom_call.1} parent=27 // pred_check_branch
          %363 = sbr.rel (%p361) target = $region44
        $region43: #{tpu_custom_call.1} parent=27 // pred_region
          %s365 = ssub.s32 128, 128
          %366 = vsyncadd %s357, %s365
          %s367 = smul.addr %s27, 2
          %s368 = sadd.s32 %s28, %s367
          %s369 = smul.addr %s368, 64
          %s370 = scalar_lea.hbm %s2, %s369
          %s371 = sshll.u32 %s360, 4
          %s372 = int_to_ptr.vmem [resolvable:$true] %s371
          %377 = dma.vmem_to_hbm [thread:$0]  %s372, 128, %s370, %s357, 64, 64, 4
        $region44: #{tpu_custom_call.1} parent=27 // pred_fallthru
          _
      $region28: #{tpu_custom_call.1} parent=5 // pred_fallthru
        _
      %p378 = scmp.le.s32.totalorder 2, %s17
      // Predicated region
      $region45: #{tpu_custom_call.1} parent=5 // pred_check
        %p379 = pneg %p378
      $region46: #{tpu_custom_call.1} parent=5 // pred_check_branch
        %381 = sbr.rel (%p379) target = $region48
      $region47: #{tpu_custom_call.1} parent=5 // pred_region
        %s382 = ssub.s32 %s17, 2
        // Predicated region
        $region49: #{tpu_custom_call.1} parent=47 // pred_check
          %p383 = pneg %p127
        $region50: #{tpu_custom_call.1} parent=47 // pred_check_branch
          %385 = sbr.rel (%p383) target = $region52
        $region51: #{tpu_custom_call.1} parent=47 // pred_region
          %s386 = sand.u32 %s112, 1
          %s387 = scalar_lea.sflag [#allocation4], %s386
          %s388 = sand.u32 %s112, 1
          %s389 = smul.addr %s388, 8
          %s390 = scalar_lea.vmem [#allocation7], %s389
          %391 = dma.done %s387, 128
        $region52: #{tpu_custom_call.1} parent=47 // pred_fallthru
          _
      $region48: #{tpu_custom_call.1} parent=5 // pred_fallthru
        _
    $region6: #{tpu_custom_call.1} parent=1 // loop_footer
      %s21 = sadd.s32 1, %s17
    $region7: #{tpu_custom_call.1} parent=1 // loop_footer_branch
      %16 = sbr.rel target = $region3
    $region8: #{tpu_custom_call.1} parent=1 // loop_exit
      _
    %392 = vsyncpa [#allocation3], 1
    %s393 = scalar_lea.sflag [#allocation3], 1
    %394 = vsyncpa %s393, 1
    %395 = vsyncpa [#allocation6], 1
    %s396 = scalar_lea.sflag [#allocation6], 1
    %397 = vsyncpa %s396, 1
    %398 = vsyncpa [#allocation4], 1
    %s399 = scalar_lea.sflag [#allocation4], 1
    %400 = vsyncpa %s399, 1

</llo_original>
